<compile_context>
chip_gen: v7x
topology: tpu7x:2x2x1
jax: 0.10.0
libtpu: 0.0.40
codegen_flags: <defaults>
</compile_context>

<pallas_src>
import functools

import jax
import jax.numpy as jnp
from jax.experimental import pallas as pl
from jax.experimental.pallas import tpu as pltpu


def _ce_sum_kernel(pred_ref, tgt_ref, out_ref, *, hw, tile, n_classes,
                   unroll_gather):
    # pred_ref: (1, C, T) logits tile;  tgt_ref: (1, 1, T) int32 targets tile
    # out_ref:  (1, 1, 128) per-tile partial-loss slab (loss in lane 0)
    j = pl.program_id(1)

    logits = pred_ref[0].astype(jnp.float32)                 # (C, T)
    tgt = tgt_ref[0]                                          # (1, T)

    # numerically stable log-sum-exp over the class axis (axis 0)
    m = jnp.max(logits, axis=0, keepdims=True)                # (1, T)
    lse = jnp.log(jnp.sum(jnp.exp(logits - m), axis=0, keepdims=True)) + m

    # gather the logit at the target class
    if unroll_gather:
        # short unrolled loop over class rows: only (1, T) temporaries
        picked = jnp.zeros_like(lse)
        for c in range(n_classes):
            picked = jnp.where(tgt == c, logits[c:c + 1], picked)
    else:
        # large-C fallback: iota compare + masked sum over C
        cls_ids = jax.lax.broadcasted_iota(jnp.int32, logits.shape, 0)
        picked = jnp.sum(jnp.where(cls_ids == tgt, logits, 0.0),
                         axis=0, keepdims=True)               # (1, T)

    # validity mask: negative targets (ignore_index / padding) contribute 0,
    # and the ragged tail of the last tile (global column >= HW) is dropped.
    col_ids = jax.lax.broadcasted_iota(jnp.int32, tgt.shape, 1) + j * tile
    valid = (tgt >= 0) & (col_ids < hw)
    loss_cols = jnp.where(valid, lse - picked, 0.0)           # select, not mul

    # lane-dense 128-wide store: partial sum in lane 0, exact zeros elsewhere
    s = jnp.sum(loss_cols)
    lane = jax.lax.broadcasted_iota(jnp.int32, (1, 128), 1)
    out_ref[0] = jnp.where(lane == 0, s, 0.0)


def _round_up(x, m):
    return (x + m - 1) // m * m


def ce_loss_sum(pred_nchw, target_nhw):
    """Cross-entropy with reduction='sum'.

    pred_nchw: (N, C, H, W) float logits (f32 or bf16; LSE math stays in f32)
    target_nhw: (N, H, W) int class indices
    returns: scalar float32 loss
    """
    N, C, H, W = pred_nchw.shape
    HW = H * W
    itemsize = jnp.dtype(pred_nchw.dtype).itemsize

    # ---- generation-aware VMEM budget (mem-bound kernel: bigger tiles win) --
    try:
        vmem_cap = int(pltpu.get_tpu_info().vmem_capacity_bytes)
    except Exception:  # conservative fallback (v7x has 64 MiB per TensorCore)
        vmem_cap = 64 * 1024 * 1024
    # ~3/4 of physical: 96 MiB on v5e/v6e (128 MiB), 48 MiB on v7x (64 MiB)
    vmem_limit = int(min(vmem_cap * 3 // 4, 112 * 1024 * 1024))

    unroll_gather = C <= 64

    # per-column footprint: double-buffered pred+tgt blocks, the f32 logits
    # copy, exp(logits - m), one slack (C,T) temp, plus the small (1,T)
    # vectors (m, lse, picked, valid, col_ids, loss). The iota-gather path
    # additionally carries the (C,T) int32 iota and its where result.
    bytes_per_col = 2 * (C * itemsize + 4) + 3 * C * 4 + 8 * 4
    if not unroll_gather:
        bytes_per_col += 2 * C * 4

    budget = max(vmem_limit - 2 * 1024 * 1024, 4 * 1024 * 1024)
    max_cols = max(budget // bytes_per_col, 128)
    tile = int(min(32768, max_cols, _round_up(HW, 128)))
    tile = max((tile // 128) * 128, 128)
    n_tiles = pl.cdiv(HW, tile)          # ragged tail masked in-kernel

    # free reshapes (row-major contiguity preserved; no HBM transpose/pad)
    pred = pred_nchw.reshape(N, C, HW)
    tgt = target_nhw.reshape(N, 1, HW).astype(jnp.int32)

    kernel = functools.partial(_ce_sum_kernel, hw=HW, tile=tile, n_classes=C,
                               unroll_gather=unroll_gather)

    # deepen buffering only if blocks stay small even at the max tile
    extra_spec_kwargs = {}
    if n_tiles >= 4 and C * tile * itemsize < (1 << 20):
        extra_spec_kwargs = dict(pipeline_mode=pl.Buffered(3))

    cost = pl.CostEstimate(
        flops=5 * N * C * HW,
        transcendentals=(C + 1) * N * HW,
        bytes_accessed=N * C * HW * itemsize + N * HW * 4 + N * n_tiles * 128 * 4,
    )

    partials = pl.pallas_call(
        kernel,
        out_shape=jax.ShapeDtypeStruct((N, n_tiles, 128), jnp.float32),
        grid_spec=pltpu.PrefetchScalarGridSpec(
            num_scalar_prefetch=0,
            grid=(N, n_tiles),
            in_specs=[
                pl.BlockSpec((1, C, tile), lambda n, j: (n, 0, j),
                             **extra_spec_kwargs),
                pl.BlockSpec((1, 1, tile), lambda n, j: (n, 0, j),
                             **extra_spec_kwargs),
            ],
            out_specs=pl.BlockSpec((1, 1, 128), lambda n, j: (n, j, 0)),
        ),
        compiler_params=pltpu.CompilerParams(
            # both axes independent -> megacore can shard HW tiles when N==1
            dimension_semantics=("parallel", "parallel"),
            vmem_limit_bytes=vmem_limit,
        ),
        cost_estimate=cost,
    )(pred, tgt)

    # only lane 0 of each partial slab is nonzero, so a plain sum is exact
    return jnp.sum(partials)


if __name__ == "__main__":
    key = jax.random.PRNGKey(0)
    k_pred, k_tgt = jax.random.split(key)

    N, C, H, W = 2, 4, 16, 16
    pred = jax.random.normal(k_pred, (N, C, H, W), dtype=jnp.float32)
    target = jax.random.randint(k_tgt, (N, H, W), 0, C, dtype=jnp.int32)

    loss = ce_loss_sum(pred, target)
    loss = jax.block_until_ready(loss)

    # reference check in plain JAX
    logits = jnp.transpose(pred, (0, 2, 3, 1)).reshape(-1, C)
    tgt = target.reshape(-1)
    logp = jax.nn.log_softmax(logits, axis=-1)
    ref = -jnp.sum(jnp.take_along_axis(logp, tgt[:, None], axis=-1))
    assert jnp.allclose(loss, ref, rtol=1e-5, atol=1e-4), (loss, ref)

    print("KERNEL_OK")
</pallas_src>

<mosaic_0001>
module attributes {stable_mosaic.version = 11 : i64} {
  func.func @_ce_sum_kernel(%arg0: i32, %arg1: i32, %arg2: memref<1x4x256xf32, #tpu.memory_space<vmem>>, %arg3: memref<1x1x256xi32, #tpu.memory_space<vmem>>, %arg4: memref<1x1x128xf32, #tpu.memory_space<vmem>>) attributes {dimension_semantics = [#tpu.dimension_semantics<parallel>, #tpu.dimension_semantics<parallel>], iteration_bounds = array<i64: 2, 1>, scalar_prefetch = 0 : i64, scratch_operands = 0 : i64, tpu.core_type = #tpu.core_type<tc>, window_params = [{transform_indices = @transform_0, window_bounds = array<i64: 1, 4, 256>}, {transform_indices = @transform_1, window_bounds = array<i64: 1, 1, 256>}, {transform_indices = @transform_2, window_bounds = array<i64: 1, 1, 128>}]} {
    %c0 = arith.constant 0 : index
    %c0_0 = arith.constant 0 : index
    %c0_1 = arith.constant 0 : index
    %0 = vector.load %arg2[%c0, %c0_0, %c0_1] : memref<1x4x256xf32, #tpu.memory_space<vmem>>, vector<1x4x256xf32>
    %1 = vector.shape_cast %0 : vector<1x4x256xf32> to vector<4x256xf32>
    %c0_2 = arith.constant 0 : index
    %c0_3 = arith.constant 0 : index
    %c0_4 = arith.constant 0 : index
    %2 = vector.load %arg3[%c0_2, %c0_3, %c0_4] : memref<1x1x256xi32, #tpu.memory_space<vmem>>, vector<1x1x256xi32>
    %3 = vector.shape_cast %2 : vector<1x1x256xi32> to vector<1x256xi32>
    %cst = arith.constant dense<0xFF800000> : vector<256xf32>
    %4 = vector.multi_reduction <maximumf>, %1, %cst [0] : vector<4x256xf32> to vector<256xf32>
    %5 = vector.shape_cast %4 : vector<256xf32> to vector<1x256xf32>
    %6 = vector.broadcast %5 : vector<1x256xf32> to vector<4x256xf32>
    %7 = arith.subf %1, %6 : vector<4x256xf32>
    %8 = math.exp %7 : vector<4x256xf32>
    %cst_5 = arith.constant dense<0.000000e+00> : vector<256xf32>
    %9 = vector.multi_reduction <add>, %8, %cst_5 [0] : vector<4x256xf32> to vector<256xf32>
    %10 = vector.shape_cast %9 : vector<256xf32> to vector<1x256xf32>
    %11 = math.log %10 : vector<1x256xf32>
    %12 = arith.addf %11, %5 : vector<1x256xf32>
    %cst_6 = arith.constant 0.000000e+00 : f32
    %13 = vector.broadcast %cst_6 : f32 to vector<1x256xf32>
    %c0_i32 = arith.constant 0 : i32
    %14 = vector.broadcast %c0_i32 : i32 to vector<1x256xi32>
    %15 = arith.cmpi eq, %3, %14 : vector<1x256xi32>
    %16 = vector.extract_strided_slice %1 {offsets = [0, 0], sizes = [1, 256], strides = [1, 1]} : vector<4x256xf32> to vector<1x256xf32>
    %17 = arith.select %15, %16, %13 : vector<1x256xi1>, vector<1x256xf32>
    %c1_i32 = arith.constant 1 : i32
    %18 = vector.broadcast %c1_i32 : i32 to vector<1x256xi32>
    %19 = arith.cmpi eq, %3, %18 : vector<1x256xi32>
    %20 = vector.extract_strided_slice %1 {offsets = [1, 0], sizes = [1, 256], strides = [1, 1]} : vector<4x256xf32> to vector<1x256xf32>
    %21 = arith.select %19, %20, %17 : vector<1x256xi1>, vector<1x256xf32>
    %c2_i32 = arith.constant 2 : i32
    %22 = vector.broadcast %c2_i32 : i32 to vector<1x256xi32>
    %23 = arith.cmpi eq, %3, %22 : vector<1x256xi32>
    %24 = vector.extract_strided_slice %1 {offsets = [2, 0], sizes = [1, 256], strides = [1, 1]} : vector<4x256xf32> to vector<1x256xf32>
    %25 = arith.select %23, %24, %21 : vector<1x256xi1>, vector<1x256xf32>
    %c3_i32 = arith.constant 3 : i32
    %26 = vector.broadcast %c3_i32 : i32 to vector<1x256xi32>
    %27 = arith.cmpi eq, %3, %26 : vector<1x256xi32>
    %28 = vector.extract_strided_slice %1 {offsets = [3, 0], sizes = [1, 256], strides = [1, 1]} : vector<4x256xf32> to vector<1x256xf32>
    %29 = arith.select %27, %28, %25 : vector<1x256xi1>, vector<1x256xf32>
    %30 = tpu.iota {dimensions = array<i32: 1>} : vector<1x256xi32>
    %c256_i32 = arith.constant 256 : i32
    %31 = arith.muli %arg1, %c256_i32 : i32
    %32 = vector.broadcast %31 : i32 to vector<1x256xi32>
    %33 = arith.addi %30, %32 : vector<1x256xi32>
    %c0_i32_7 = arith.constant 0 : i32
    %34 = vector.broadcast %c0_i32_7 : i32 to vector<1x256xi32>
    %35 = arith.cmpi sge, %3, %34 : vector<1x256xi32>
    %c256_i32_8 = arith.constant 256 : i32
    %36 = vector.broadcast %c256_i32_8 : i32 to vector<1x256xi32>
    %37 = arith.cmpi slt, %33, %36 : vector<1x256xi32>
    %38 = arith.andi %35, %37 : vector<1x256xi1>
    %39 = arith.subf %12, %29 : vector<1x256xf32>
    %cst_9 = arith.constant 0.000000e+00 : f32
    %40 = vector.broadcast %cst_9 : f32 to vector<1x256xf32>
    %41 = arith.select %38, %39, %40 : vector<1x256xi1>, vector<1x256xf32>
    %42 = vector.shape_cast %41 : vector<1x256xf32> to vector<1x1x256xf32>
    %cst_10 = arith.constant dense<0.000000e+00> : vector<1xf32>
    %43 = vector.multi_reduction <add>, %42, %cst_10 [1, 2] : vector<1x1x256xf32> to vector<1xf32>
    %44 = vector.shape_cast %43 : vector<1xf32> to vector<1x1x1xf32>
    %45 = vector.extract %44[0, 0, 0] : f32 from vector<1x1x1xf32>
    %46 = tpu.iota {dimensions = array<i32: 1>} : vector<1x128xi32>
    %c0_i32_11 = arith.constant 0 : i32
    %47 = vector.broadcast %c0_i32_11 : i32 to vector<1x128xi32>
    %48 = arith.cmpi eq, %46, %47 : vector<1x128xi32>
    %cst_12 = arith.constant 0.000000e+00 : f32
    %49 = vector.broadcast %45 : f32 to vector<1x128xf32>
    %50 = vector.broadcast %cst_12 : f32 to vector<1x128xf32>
    %51 = arith.select %48, %49, %50 : vector<1x128xi1>, vector<1x128xf32>
    %c0_13 = arith.constant 0 : index
    %c0_14 = arith.constant 0 : index
    %c0_15 = arith.constant 0 : index
    %52 = vector.load %arg4[%c0_13, %c0_14, %c0_15] : memref<1x1x128xf32, #tpu.memory_space<vmem>>, vector<1x1x128xf32>
    %53 = vector.shape_cast %52 : vector<1x1x128xf32> to vector<1x128xf32>
    %54 = vector.shape_cast %51 : vector<1x128xf32> to vector<1x1x128xf32>
    tpu.vector_store %arg4[%c0_13, %c0_14, %c0_15], %54 {strides = array<i32>} : memref<1x1x128xf32, #tpu.memory_space<vmem>>, vector<1x1x128xf32>,
    return
  }
  func.func @transform_0(%arg0: i32, %arg1: i32) -> (i32, i32, i32) {
    %c0_i32 = arith.constant 0 : i32
    %c0_i32_0 = arith.constant 0 : i32
    return %arg0, %c0_i32, %arg1 : i32, i32, i32
  }
  func.func @transform_1(%arg0: i32, %arg1: i32) -> (i32, i32, i32) {
    %c0_i32 = arith.constant 0 : i32
    %c0_i32_0 = arith.constant 0 : i32
    return %arg0, %c0_i32, %arg1 : i32, i32, i32
  }
  func.func @transform_2(%arg0: i32, %arg1: i32) -> (i32, i32, i32) {
    %c0_i32 = arith.constant 0 : i32
    %c0_i32_0 = arith.constant 0 : i32
    return %arg0, %arg1, %c0_i32 : i32, i32, i32
  }
}

</mosaic_0001>

<llo_original>
// kernel: tpu_custom_call.1
$region0: #{tpu_custom_call.1}
  #allocation0 [shape = 'u32[]', space=smem, size = 0x4, offset = 0x4, fixed_abs, tag = 'smem constant byte address 0x4 - core index']
  #allocation1 [shape = 'u32[144,128]{1,0:T(1,128)}', space=vmem, size = 0x12000, scoped, tag = 'internal scratch']
  %s0 = inlined_call_operand.hbm [shape: f32[2,4,256], index: 0, kind: input, shape index: {}]
  %s1 = inlined_call_operand.hbm [shape: s32[2,1,256], index: 1, kind: input, shape index: {}]
  %s2 = inlined_call_operand.hbm [shape: f32[2,1,128], index: 2, kind: output, shape index: {}]
  %s3 = sld [smem:[#allocation0]]
  $region49: #{tpu_custom_call.1} parent=0
    _
  %s5 = ssub.s32 1, %s3
  %s6 = scalar_select 0, %s5, %s3
  $region1: #{tpu_custom_call.1} parent=0
    #allocation2 [shape = 'u8[8192]{0}', space=vmem, size = 0x2000, scoped, tag = 'input window, operand 0']
    #allocation3 [shape = 's32[2]{0}', space=sflag, size = 0x8, scoped, tag = 'scoped memory for tpu_custom_call.1']
    #allocation4 [shape = 's32[2]{0}', space=sflag, size = 0x8, scoped, tag = 'scoped memory for tpu_custom_call.1']
    #allocation5 [shape = 'u8[2048]{0}', space=vmem, size = 0x800, scoped, tag = 'input window, operand 1']
    #allocation6 [shape = 's32[2]{0}', space=sflag, size = 0x8, scoped, tag = 'scoped memory for tpu_custom_call.1']
    #allocation7 [shape = 'u8[1024]{0}', space=vmem, size = 0x400, scoped, tag = 'output window, operand 0']
    %7 = vsyncpa [#allocation3], 0
    %s8 = scalar_lea.sflag [#allocation3], 1
    %9 = vsyncpa %s8, 0
    %10 = vsyncpa [#allocation6], 0
    %s11 = scalar_lea.sflag [#allocation6], 1
    %12 = vsyncpa %s11, 0
    %13 = vsyncpa [#allocation4], 0
    %s14 = scalar_lea.sflag [#allocation4], 1
    %15 = vsyncpa %s14, 0
    loop: start=0, step=1, limit=4
    $region2: #{tpu_custom_call.1} parent=1 // loop_pre_header
      _
    $region3: #{tpu_custom_call.1} parent=1 // loop_header
      %s17 = sphi 0, %s21
      %p18 = scmp.ge.s32.totalorder %s17, 4
      %s24 = sphi 0, %s36
      %s25 = sphi 0, %s32
      %s26 = sphi 0, %s24
      %s27 = sphi 0, %s25
      %s28 = sphi 0, %s26
      %s29 = sphi 0, %s27
      %s41 = sphi 0, %s43
      %s44 = sphi 0, %s41
      %s45 = sphi 0, %s44
      %s61 = sphi 0, %s45
      %s69 = sphi 0, %s71
      %s72 = sphi 0, %s69
      %s73 = sphi 0, %s72
      %s89 = sphi 0, %s73
      %s97 = sphi 0, %s99
      %s100 = sphi 0, %s97
      %s101 = sphi 0, %s100
      %s117 = sphi 0, %s101
    $region4: #{tpu_custom_call.1} parent=1 // loop_header_branch
      %20 = sbr.rel (%p18) target = $region8
    $region5: #{tpu_custom_call.1} parent=1 // loop_body
      %s22 = ssub.s32 %s17, 1
      %s23 = ssub.s32 %s17, 2
      %s30 = sadd.s32 1, %s25
      %p31 = scmp.ge.s32.totalorder %s30, 1
      %s32 = scalar_select %p31, 0, %s30
      %s33 = sadd.s32 1, %s24
      %s34 = scalar_select %p31, %s33, %s24
      %p35 = scmp.ge.s32.totalorder %s34, 2
      %s36 = scalar_select %p35, 0, %s34
      %s37 = ssub.s32 %s24, %s36
      %s38 = ssub.s32 %s25, %s32
      %s39 = sor.u32 %s37, %s38
      %p40 = scmp.eq.s32.totalorder %s39, 0
      %s42 = sadd.s32 %s41, 1
      %s43 = scalar_select %p40, %s41, %s42
      %p46 = pneg %p40
      %p47 = scmp.eq.s32.totalorder %s17, 1
      %p48 = por %p46, %p47
      %p49 = scmp.ne.s32.totalorder %s41, %s44
      %p50 = scmp.eq.s32.totalorder %s17, 0
      %p51 = por %p49, %p50
      %p52 = scmp.ne.s32.totalorder %s41, %s44
      %p53 = scmp.eq.s32.totalorder %s22, 1
      %p54 = por %p52, %p53
      %p55 = scmp.ne.s32.totalorder %s44, %s45
      %p56 = scmp.eq.s32.totalorder %s22, 0
      %p57 = por %p55, %p56
      %p58 = scmp.ne.s32.totalorder %s44, %s45
      %p59 = scmp.eq.s32.totalorder %s23, 1
      %p60 = por %p58, %p59
      %p62 = scmp.ne.s32.totalorder %s45, %s61
      %p63 = scmp.eq.s32.totalorder %s23, 0
      %p64 = por %p62, %p63
      %s65 = ssub.s32 %s24, %s36
      %s66 = ssub.s32 %s25, %s32
      %s67 = sor.u32 %s65, %s66
      %p68 = scmp.eq.s32.totalorder %s67, 0
      %s70 = sadd.s32 %s69, 1
      %s71 = scalar_select %p68, %s69, %s70
      %p74 = pneg %p68
      %p75 = scmp.eq.s32.totalorder %s17, 1
      %p76 = por %p74, %p75
      %p77 = scmp.ne.s32.totalorder %s69, %s72
      %p78 = scmp.eq.s32.totalorder %s17, 0
      %p79 = por %p77, %p78
      %p80 = scmp.ne.s32.totalorder %s69, %s72
      %p81 = scmp.eq.s32.totalorder %s22, 1
      %p82 = por %p80, %p81
      %p83 = scmp.ne.s32.totalorder %s72, %s73
      %p84 = scmp.eq.s32.totalorder %s22, 0
      %p85 = por %p83, %p84
      %p86 = scmp.ne.s32.totalorder %s72, %s73
      %p87 = scmp.eq.s32.totalorder %s23, 1
      %p88 = por %p86, %p87
      %p90 = scmp.ne.s32.totalorder %s73, %s89
      %p91 = scmp.eq.s32.totalorder %s23, 0
      %p92 = por %p90, %p91
      %s93 = ssub.s32 %s24, %s36
      %s94 = ssub.s32 %s25, %s32
      %s95 = sor.u32 %s93, %s94
      %p96 = scmp.eq.s32.totalorder %s95, 0
      %s98 = sadd.s32 %s97, 1
      %s99 = scalar_select %p96, %s97, %s98
      %p102 = pneg %p96
      %p103 = scmp.eq.s32.totalorder %s17, 1
      %p104 = por %p102, %p103
      %p105 = scmp.ne.s32.totalorder %s97, %s100
      %p106 = scmp.eq.s32.totalorder %s17, 0
      %p107 = por %p105, %p106
      %p108 = scmp.ne.s32.totalorder %s97, %s100
      %p109 = scmp.eq.s32.totalorder %s22, 1
      %p110 = por %p108, %p109
      %p111 = scmp.ne.s32.totalorder %s100, %s101
      %p112 = scmp.eq.s32.totalorder %s22, 0
      %p113 = por %p111, %p112
      %p114 = scmp.ne.s32.totalorder %s100, %s101
      %p115 = scmp.eq.s32.totalorder %s23, 1
      %p116 = por %p114, %p115
      %p118 = scmp.ne.s32.totalorder %s101, %s117
      %p119 = scmp.eq.s32.totalorder %s23, 0
      %p120 = por %p118, %p119
      %p121 = scmp.le.s32.totalorder 1, %s17
      %p122 = scmp.lt.s32.totalorder %s17, 3
      %p123 = pnand %p121, %p122
      %p124 = pneg %p123
      // Predicated region
      $region9: #{tpu_custom_call.1} parent=5 // pred_check
        _
      $region10: #{tpu_custom_call.1} parent=5 // pred_check_branch
        %126 = sbr.rel (%p123) target = $region12
      $region11: #{tpu_custom_call.1} parent=5 // pred_region
        %s127 = ssub.s32 %s17, 1
      $region12: #{tpu_custom_call.1} parent=5 // pred_fallthru
        _
      %p128 = scmp.lt.s32.totalorder %s17, 2
      // Predicated region
      $region13: #{tpu_custom_call.1} parent=5 // pred_check
        %p129 = pneg %p128
      $region14: #{tpu_custom_call.1} parent=5 // pred_check_branch
        %131 = sbr.rel (%p129) target = $region16
      $region15: #{tpu_custom_call.1} parent=5 // pred_region
        // Predicated region
        $region17: #{tpu_custom_call.1} parent=15 // pred_check
          %p132 = pneg %p51
        $region18: #{tpu_custom_call.1} parent=15 // pred_check_branch
          %134 = sbr.rel (%p132) target = $region20
        $region19: #{tpu_custom_call.1} parent=15 // pred_region
          %s135 = sand.u32 %s41, 1
          %s136 = scalar_lea.sflag [#allocation3], %s135
          %s137 = sand.u32 %s41, 1
          %s138 = smul.addr %s137, 8
          %s139 = scalar_lea.vmem [#allocation2], %s138
          %s140 = smul.u32 2, %s25
          %s142 = ssub.s32 128, 128
          %143 = vsyncadd %s136, %s142
          %s144 = smul.addr %s24, 2
          %s145 = sadd.s32 %s140, %s144
          %s146 = smul.addr %s145, 64
          %s147 = scalar_lea.hbm %s0, %s146
          %s149 = sshll.u32 %s139, 4
          %s150 = int_to_ptr.vmem [resolvable:$true] %s149
          %152 = dma.hbm_to_vmem [thread:$0]  %s147, 128, %s150, %s136
        $region20: #{tpu_custom_call.1} parent=15 // pred_fallthru
          _
        // Predicated region
        $region21: #{tpu_custom_call.1} parent=15 // pred_check
          %p153 = pneg %p79
        $region22: #{tpu_custom_call.1} parent=15 // pred_check_branch
          %155 = sbr.rel (%p153) target = $region24
        $region23: #{tpu_custom_call.1} parent=15 // pred_region
          %s156 = sand.u32 %s69, 1
          %s157 = scalar_lea.sflag [#allocation6], %s156
          %s158 = sand.u32 %s69, 1
          %s159 = smul.addr %s158, 2
          %s160 = scalar_lea.vmem [#allocation5], %s159
          %s161 = smul.u32 2, %s25
          %s163 = ssub.s32 32, 32
          %164 = vsyncadd %s157, %s163
          %s165 = smul.addr %s24, 2
          %s166 = sadd.s32 %s161, %s165
          %s167 = smul.addr %s166, 16
          %s168 = scalar_lea.hbm %s1, %s167
          %s170 = sshll.u32 %s160, 4
          %s171 = int_to_ptr.vmem [resolvable:$true] %s170
          %173 = dma.hbm_to_vmem [thread:$0]  %s168, 32, %s171, %s157
        $region24: #{tpu_custom_call.1} parent=15 // pred_fallthru
          _
      $region16: #{tpu_custom_call.1} parent=5 // pred_fallthru
        _
      %p174 = scmp.le.s32.totalorder 1, %s17
      %p175 = scmp.lt.s32.totalorder %s17, 3
      %p176 = pnand %p174, %p175
      %p177 = pneg %p176
      // Predicated region
      $region25: #{tpu_custom_call.1} parent=5 // pred_check
        _
      $region26: #{tpu_custom_call.1} parent=5 // pred_check_branch
        %179 = sbr.rel (%p176) target = $region28
      $region27: #{tpu_custom_call.1} parent=5 // pred_region
        %s180 = ssub.s32 %s17, 1
        %s181 = sand.u32 %s44, 1
        %s182 = scalar_lea.sflag [#allocation3], %s181
        %s183 = sand.u32 %s44, 1
        %s184 = smul.addr %s183, 8
        %s185 = scalar_lea.vmem [#allocation2], %s184
        // Predicated region
        $region29: #{tpu_custom_call.1} parent=27 // pred_check
          %p186 = pneg %p57
        $region30: #{tpu_custom_call.1} parent=27 // pred_check_branch
          %188 = sbr.rel (%p186) target = $region32
        $region31: #{tpu_custom_call.1} parent=27 // pred_region
          %189 = dma.done %s182, 128
        $region32: #{tpu_custom_call.1} parent=27 // pred_fallthru
          _
        %s190 = sand.u32 %s72, 1
        %s191 = scalar_lea.sflag [#allocation6], %s190
        %s192 = sand.u32 %s72, 1
        %s193 = smul.addr %s192, 2
        %s194 = scalar_lea.vmem [#allocation5], %s193
        // Predicated region
        $region33: #{tpu_custom_call.1} parent=27 // pred_check
          %p195 = pneg %p85
        $region34: #{tpu_custom_call.1} parent=27 // pred_check_branch
          %197 = sbr.rel (%p195) target = $region36
        $region35: #{tpu_custom_call.1} parent=27 // pred_region
          %198 = dma.done %s191, 32
        $region36: #{tpu_custom_call.1} parent=27 // pred_fallthru
          _
        %s199 = sand.u32 %s44, 1
        %s200 = scalar_lea.sflag [#allocation3], %s199
        %s201 = sand.u32 %s44, 1
        %s202 = smul.addr %s201, 8
        %s203 = scalar_lea.vmem [#allocation2], %s202
        %p204 = pneg %p57
        %p205 = pneg %p54
        %s206 = sand.u32 %s72, 1
        %s207 = scalar_lea.sflag [#allocation6], %s206
        %s208 = sand.u32 %s72, 1
        %s209 = smul.addr %s208, 2
        %s210 = scalar_lea.vmem [#allocation5], %s209
        %p211 = pneg %p85
        %p212 = pneg %p82
        %p213 = pneg %p113
        %p214 = pneg %p110
        %s215 = sand.u32 %s100, 1
        %s216 = scalar_lea.sflag [#allocation4], %s215
        %s217 = sand.u32 %s100, 1
        %s218 = scalar_lea.vmem [#allocation7], %s217
        %s219 = smul.u32 2, %s27
        %s220 = smul.u32 2, %s27
        %v221 = vld [vmem:[%s185] sm:$0xff]
        %v222 = vld [vmem:[%s194] sm:$0x3]
        %v224 = vcombine.high %v221, %v221
        %vm226 = vcmask 1043456
        %v227 = vsel %vm226, %v221, -inf
        %v228 = vrot.slane %v227, 4
        %v229 = vmax.f32 %v227, %v228
        %v230 = vrot.slane %v229, 2
        %v231 = vmax.f32 %v229, %v230
        %v232 = vrot.slane %v231, 1
        %v233 = vmax.f32 %v231, %v232
        %v234 = vsel %vm226, %v224, -inf
        %v235 = vrot.slane %v234, 4
        %v236 = vmax.f32 %v234, %v235
        %v237 = vrot.slane %v236, 2
        %v238 = vmax.f32 %v236, %v237
        %v239 = vrot.slane %v238, 1
        %v240 = vmax.f32 %v238, %v239
        %v243 = vcombine.low %v233, %v240
        %v245 = vsub.f32 %v221, %v243
        %v246 = vmul.f32 %v245, 1.442695
        %v247 = vpow.pop %v246
        %v249 = vcombine.high %v247, %v247
        %v251 = vsel %vm226, %v247, 0.0
        %v252 = vrot.slane %v251, 4
        %v253 = vadd.f32 %v251, %v252
        %v254 = vrot.slane %v253, 2
        %v255 = vadd.f32 %v253, %v254
        %v256 = vrot.slane %v255, 1
        %v257 = vadd.f32 %v255, %v256
        %v258 = vsel %vm226, %v249, 0.0
        %v259 = vrot.slane %v258, 4
        %v260 = vadd.f32 %v258, %v259
        %v261 = vrot.slane %v260, 2
        %v262 = vadd.f32 %v260, %v261
        %v263 = vrot.slane %v262, 1
        %v264 = vadd.f32 %v262, %v263
        %v265 = vlog2.pop %v257
        %v266 = vmul.f32 %v265, 0.6931472
        %v267 = vlog2.pop %v264
        %v268 = vmul.f32 %v267, 0.6931472
        %v269 = vadd.f32 %v266, %v233
        %v270 = vadd.f32 %v268, %v240
        %vm271 = vcmp.eq.s32.totalorder %v222, 0
        %v273 = vunpack.c.l.s4 1966171168
        %v274 = vunpack.c.0.s8 %v273
        %v275 = vlaneseq
        %v276 = vshrl.u32 %v275, 7
        %v277 = vsub.s32 %v274, %v276
        %v278 = vrot.slane %v221, %v277
        %v280 = vunpack.c.l.s4 1966171168
        %v281 = vunpack.c.0.s8 %v280
        %v282 = vlaneseq
        %v283 = vshrl.u32 %v282, 7
        %v284 = vsub.s32 %v281, %v283
        %v285 = vrot.slane %v278, %v284
        %v287 = vsel %vm271, %v285, 0.0
        %vm288 = vcmp.eq.s32.totalorder %v222, 1
        %v289 = vcombine.high %v278, %v278
        %v291 = vunpack.c.l.s4 1966171168
        %v292 = vunpack.c.0.s8 %v291
        %v293 = vlaneseq
        %v294 = vshrl.u32 %v293, 7
        %v295 = vsub.s32 %v292, %v294
        %v296 = vrot.slane %v289, %v295
        %v298 = vsel %vm288, %v296, %v287
        %vm299 = vcmp.eq.s32.totalorder %v222, 2
        %v300 = vcombine.high %v285, %v285
        %v302 = vsel %vm299, %v300, %v298
        %vm303 = vcmp.eq.s32.totalorder %v222, 3
        %v304 = vcombine.high %v296, %v296
        %v306 = vsel %vm303, %v304, %v302
        %v307 = vlaneseq
        %v308 = vand.u32 %v307, 127
        %v309 = vadd.s32 %v308, 128
        %s310 = smul.u32 %s27, 256
        %v311 = vstv %s310
        %v312 = vadd.s32 %v308, %v311
        %v313 = vadd.s32 %v309, %v311
        %vm314 = vcmp.ge.s32.totalorder %v222, 0
        %vm315 = vcmp.lt.s32.totalorder %v312, 256
        %vm316 = vcmp.lt.s32.totalorder %v313, 256
        %v317 = vsel %vm315, 1, 0
        %v318 = vsel %vm316, 1, 0
        %v319 = vcombine.low %v317, %v318
        %v321 = vunpack.c.l.s4 1966171168
        %v322 = vunpack.c.0.s8 %v321
        %v323 = vlaneseq
        %v324 = vshrl.u32 %v323, 7
        %v325 = vsub.s32 %v322, %v324
        %v326 = vrot.slane %v319, %v325
        %v328 = vunpack.c.l.s4 1966171168
        %v329 = vunpack.c.0.s8 %v328
        %v330 = vlaneseq
        %v331 = vshrl.u32 %v330, 7
        %v332 = vsub.s32 %v329, %v331
        %v333 = vrot.slane %v326, %v332
        %vm334 = vcmp.ne.s32.totalorder %v333, 0
        %vm335 = vmand %vm314, %vm334
        %v337 = vlaneseq
        %v338 = vshrl.u32 %v337, 7
        %v339 = vsub.s32 0, %v338
        %v340 = vrot.slane %v306, %v339
        %v341 = vlaneseq
        %v342 = vshrl.u32 %v341, 7
        %v343 = vsub.s32 1, %v342
        %v344 = vrot.slane %v306, %v343
        %v347 = vsub.f32 %v269, %v340
        %v348 = vsub.f32 %v270, %v344
        %v351 = vcombine.low %v347, %v348
        %v353 = vunpack.c.l.s4 1966171168
        %v354 = vunpack.c.0.s8 %v353
        %v355 = vlaneseq
        %v356 = vshrl.u32 %v355, 7
        %v357 = vsub.s32 %v354, %v356
        %v358 = vrot.slane %v351, %v357
        %v360 = vunpack.c.l.s4 1966171168
        %v361 = vunpack.c.0.s8 %v360
        %v362 = vlaneseq
        %v363 = vshrl.u32 %v362, 7
        %v364 = vsub.s32 %v361, %v363
        %v365 = vrot.slane %v358, %v364
        %v367 = vsel %vm335, %v365, 0.0
        %v369 = vlaneseq
        %v370 = vshrl.u32 %v369, 7
        %v371 = vsub.s32 0, %v370
        %v372 = vrot.slane %v367, %v371
        %v373 = vlaneseq
        %v374 = vshrl.u32 %v373, 7
        %v375 = vsub.s32 1, %v374
        %v376 = vrot.slane %v367, %v375
        %vm379 = vcmask 1040384
        %v380 = vsel %vm379, %v372, 0.0
        %v381 = vsel %vm379, %v376, 0.0
        %v382 = vadd.f32 %v380, %v381
        %383 = vadd.xlane.f32.xlu0 %v382
        %v384 = vpop.xlane.xlu0 %383
        %v385 = vrot.slane %v384, 4
        %v386 = vadd.f32 %v384, %v385
        %v387 = vrot.slane %v386, 2
        %v388 = vadd.f32 %v386, %v387
        %v389 = vrot.slane %v388, 1
        %v390 = vadd.f32 %v388, %v389
        %s391 = vtos %v390
        %vm392 = vcmp.eq.s32.totalorder %v308, 0
        %v393 = vstv %s391
        %v394 = vsel %vm392, %v393, 0.0
        %395 = vst [vmem:[%s218] sm:$0x1] %v394
        %s396 = sand.u32 %s100, 1
        %s397 = scalar_lea.sflag [#allocation4], %s396
        %s398 = sand.u32 %s100, 1
        %s399 = scalar_lea.vmem [#allocation7], %s398
        // Predicated region
        $region37: #{tpu_custom_call.1} parent=27 // pred_check
          %p400 = pneg %p110
        $region38: #{tpu_custom_call.1} parent=27 // pred_check_branch
          %402 = sbr.rel (%p400) target = $region40
        $region39: #{tpu_custom_call.1} parent=27 // pred_region
          %s404 = ssub.s32 16, 16
          %405 = vsyncadd %s397, %s404
          %s406 = sadd.s32 %s27, %s26
          %s407 = smul.addr %s406, 16
          %s408 = scalar_lea.hbm %s2, %s407
          %s410 = sshll.u32 %s399, 4
          %s411 = int_to_ptr.vmem [resolvable:$true] %s410
          %413 = dma.vmem_to_hbm [thread:$0]  %s411, 16, %s408, %s397
        $region40: #{tpu_custom_call.1} parent=27 // pred_fallthru
          _
      $region28: #{tpu_custom_call.1} parent=5 // pred_fallthru
        _
      %p414 = scmp.le.s32.totalorder 2, %s17
      // Predicated region
      $region41: #{tpu_custom_call.1} parent=5 // pred_check
        %p415 = pneg %p414
      $region42: #{tpu_custom_call.1} parent=5 // pred_check_branch
        %417 = sbr.rel (%p415) target = $region44
      $region43: #{tpu_custom_call.1} parent=5 // pred_region
        %s418 = ssub.s32 %s17, 2
        // Predicated region
        $region45: #{tpu_custom_call.1} parent=43 // pred_check
          %p419 = pneg %p116
        $region46: #{tpu_custom_call.1} parent=43 // pred_check_branch
          %421 = sbr.rel (%p419) target = $region48
        $region47: #{tpu_custom_call.1} parent=43 // pred_region
          %s422 = sand.u32 %s101, 1
          %s423 = scalar_lea.sflag [#allocation4], %s422
          %s424 = sand.u32 %s101, 1
          %s425 = scalar_lea.vmem [#allocation7], %s424
          %426 = dma.done %s423, 16
        $region48: #{tpu_custom_call.1} parent=43 // pred_fallthru
          _
      $region44: #{tpu_custom_call.1} parent=5 // pred_fallthru
        _
    $region6: #{tpu_custom_call.1} parent=1 // loop_footer
      %s21 = sadd.s32 1, %s17
    $region7: #{tpu_custom_call.1} parent=1 // loop_footer_branch
      %16 = sbr.rel target = $region3
    $region8: #{tpu_custom_call.1} parent=1 // loop_exit
      _
    %427 = vsyncpa [#allocation3], 1
    %s428 = scalar_lea.sflag [#allocation3], 1
    %429 = vsyncpa %s428, 1
    %430 = vsyncpa [#allocation6], 1
    %s431 = scalar_lea.sflag [#allocation6], 1
    %432 = vsyncpa %s431, 1
    %433 = vsyncpa [#allocation4], 1
    %s434 = scalar_lea.sflag [#allocation4], 1
    %435 = vsyncpa %s434, 1

</llo_original>
